<compile_context>
chip_gen: v7x
topology: tpu7x:2x2x1
jax: 0.10.0
libtpu: 0.0.40
codegen_flags: <defaults>
</compile_context>

<pallas_src>
import functools
import math

import jax
import jax.numpy as jnp
from jax import lax
from jax.experimental import pallas as pl
from jax.experimental.pallas import tpu as pltpu


def _sdpa_kernel(*refs, inv_sqrt_dim, with_trust, return_attn):
    q_ref, k_ref, v_ref = refs[0], refs[1], refs[2]
    i = 3
    t_ref = None
    if with_trust:
        t_ref = refs[i]
        i += 1
    ctx_ref = refs[i]
    i += 1
    attn_ref = refs[i] if return_attn else None

    q = q_ref[...]          # (TB, tq, D)  native dtype
    k = k_ref[...]          # (TB, Lk, D)
    v = v_ref[...]          # (TB, Lk, D)

    # Fold 1/sqrt(d) into q: touches tq*D elements instead of tq*Lk and keeps
    # the operand in its native dtype for full MXU throughput.
    qs = q * jnp.asarray(inv_sqrt_dim, dtype=q.dtype)

    # (TB, tq, D) x (TB, Lk, D) -> (TB, tq, Lk), contracting the last dims of
    # both operands: no k transpose, f32 accumulation on the MXU.
    s = lax.dot_general(
        qs, k,
        dimension_numbers=(((2,), (2,)), ((0,), (0,))),
        preferred_element_type=jnp.float32)

    if with_trust:
        t = t_ref[...].astype(jnp.float32)
        s = s * t

    # Numerically stable softmax over the key axis.
    m = jnp.max(s, axis=-1, keepdims=True)
    e = jnp.exp(s - m)

    if with_trust:
        # Fused re-weighting: softmax(s)*t / sum(softmax(s)*t) == (e*t)/sum(e*t)
        w = e * t
    else:
        w = e

    denom = jnp.sum(w, axis=-1, keepdims=True)
    denom = jnp.maximum(denom, jnp.finfo(jnp.float32).tiny)  # guard zero rows
    p = w * pl.reciprocal(denom, approx=True)                # EUP, ~free slot

    # (TB, tq, Lk) x (TB, Lk, D) -> (TB, tq, D); probs cast back to the value
    # dtype so bf16 values keep full MXU throughput.
    ctx = lax.dot_general(
        p.astype(v.dtype), v,
        dimension_numbers=(((2,), (1,)), ((0,), (0,))),
        preferred_element_type=jnp.float32)

    ctx_ref[...] = ctx.astype(ctx_ref.dtype)
    if return_attn:
        attn_ref[...] = p.astype(attn_ref.dtype)


def scaled_dot_product_attention(query, key, value, trust_score=None, *,
                                 return_attn=False, batch_tile=None,
                                 q_tile=None):
    """Pallas equivalent of ScaledDotProductAttention.forward.

    query: (B, Lq, D), key/value: (B, Lk, D), trust_score: (B, Lq, Lk) or None.
    Returns context (B, Lq, D); with return_attn=True also returns the
    (re-weighted) attention matrix (B, Lq, Lk) in the input dtype.
    """
    B, Lq, D = query.shape
    _, Lk, _ = key.shape
    inv_sqrt_dim = 1.0 / math.sqrt(D)

    # ----- tile selection ----------------------------------------------
    # Target a few hundred q-rows of work per grid step: tile Lq for long
    # sequences (q_tile multiple of 8), pack batches for tiny Lq.
    if q_tile is None:
        q_tile = Lq if Lq <= 512 else 256
    q_tile = min(q_tile, Lq)
    if batch_tile is None:
        batch_tile = max(1, min(B, 512 // max(q_tile, 1)))
        batch_tile = math.gcd(B, batch_tile)   # keep the grid evenly divisible
    TB = batch_tile

    grid = (pl.cdiv(B, TB), pl.cdiv(Lq, q_tile))
    with_trust = trust_score is not None

    q_spec = pl.BlockSpec((TB, q_tile, D), lambda b, i: (b, i, 0))
    kv_spec = pl.BlockSpec((TB, Lk, D), lambda b, i: (b, 0, 0))
    t_spec = pl.BlockSpec((TB, q_tile, Lk), lambda b, i: (b, i, 0))

    in_specs = [q_spec, kv_spec, kv_spec]
    args = [query, key, value]
    if with_trust:
        in_specs.append(t_spec)
        args.append(trust_score)

    out_specs = [pl.BlockSpec((TB, q_tile, D), lambda b, i: (b, i, 0))]
    out_shape = [jax.ShapeDtypeStruct((B, Lq, D), query.dtype)]
    if return_attn:
        out_specs.append(t_spec)
        out_shape.append(jax.ShapeDtypeStruct((B, Lq, Lk), query.dtype))

    kernel = functools.partial(
        _sdpa_kernel, inv_sqrt_dim=inv_sqrt_dim,
        with_trust=with_trust, return_attn=return_attn)

    outs = pl.pallas_call(
        kernel,
        out_shape=tuple(out_shape),
        grid_spec=pltpu.PrefetchScalarGridSpec(
            num_scalar_prefetch=0,
            grid=grid,
            in_specs=in_specs,
            out_specs=tuple(out_specs),
        ),
        compiler_params=pltpu.CompilerParams(
            # Both grid axes are independent -> shard across the two v7x TCs;
            # no-op on single-TC v5e/v6e.
            dimension_semantics=("parallel", "parallel"),
            # Above the 32 MiB scoped default, below v7x's 64 MiB physical
            # VMEM with ~25% headroom; tile sizes above keep the double-
            # buffered footprint well inside this.
            vmem_limit_bytes=48 * 1024 * 1024,
        ),
    )(*args)

    if return_attn:
        return outs[0], outs[1]
    return outs[0]


def _reference(query, key, value, trust_score=None):
    d = query.shape[-1]
    score = jnp.einsum("bqd,bkd->bqk", query.astype(jnp.float32),
                       key.astype(jnp.float32)) / jnp.sqrt(jnp.float32(d))
    if trust_score is not None:
        score = score * trust_score
    attn = jax.nn.softmax(score, axis=-1)
    if trust_score is not None:
        attn = attn * trust_score
        attn = attn / jnp.sum(attn, axis=-1, keepdims=True)
    ctx = jnp.einsum("bqk,bkd->bqd", attn, value.astype(jnp.float32))
    return ctx, attn


if __name__ == "__main__":
    key_rng = jax.random.PRNGKey(0)
    k1, k2, k3, k4 = jax.random.split(key_rng, 4)

    B, Lq, Lk, D = 2, 8, 8, 32
    query = jax.random.normal(k1, (B, Lq, D), dtype=jnp.float32)
    key = jax.random.normal(k2, (B, Lk, D), dtype=jnp.float32)
    value = jax.random.normal(k3, (B, Lk, D), dtype=jnp.float32)
    trust = jax.nn.sigmoid(jax.random.normal(k4, (B, Lq, Lk), dtype=jnp.float32))

    # pl.reciprocal(approx=True) + native-dtype matmuls -> slightly looser
    # tolerance than a pure-f32 reference.
    TOL = dict(atol=2e-2, rtol=2e-2)

    # Path 1: plain scaled dot-product attention (forward returns context only).
    ctx = scaled_dot_product_attention(query, key, value)
    jax.block_until_ready(ctx)
    ref_ctx, ref_attn = _reference(query, key, value)
    assert ctx.shape == (B, Lq, D)
    assert jnp.allclose(ctx, ref_ctx, **TOL)

    # Optional attention-matrix output (matches the module's self.attn).
    ctx2, attn2 = scaled_dot_product_attention(query, key, value,
                                               return_attn=True)
    jax.block_until_ready(ctx2)
    assert jnp.allclose(ctx2, ref_ctx, **TOL)
    assert jnp.allclose(attn2, ref_attn, **TOL)

    # Path 2: with trust_score re-weighting (fused normalization in-kernel).
    ctx_t, attn_t = scaled_dot_product_attention(query, key, value, trust,
                                                 return_attn=True)
    jax.block_until_ready(ctx_t)
    ref_ctx_t, ref_attn_t = _reference(query, key, value, trust)
    assert jnp.allclose(ctx_t, ref_ctx_t, **TOL)
    assert jnp.allclose(attn_t, ref_attn_t, **TOL)

    print("KERNEL_OK")
</pallas_src>

<mosaic_0001>
module attributes {stable_mosaic.version = 11 : i64} {
  func.func @_sdpa_kernel(%arg0: i32, %arg1: i32, %arg2: memref<2x8x32xf32, #tpu.memory_space<vmem>>, %arg3: memref<2x8x32xf32, #tpu.memory_space<vmem>>, %arg4: memref<2x8x32xf32, #tpu.memory_space<vmem>>, %arg5: memref<2x8x32xf32, #tpu.memory_space<vmem>>) attributes {dimension_semantics = [#tpu.dimension_semantics<parallel>, #tpu.dimension_semantics<parallel>], iteration_bounds = array<i64: 1, 1>, scalar_prefetch = 0 : i64, scratch_operands = 0 : i64, tpu.core_type = #tpu.core_type<tc>, window_params = [{transform_indices = @transform_0, window_bounds = array<i64: 2, 8, 32>}, {transform_indices = @transform_1, window_bounds = array<i64: 2, 8, 32>}, {transform_indices = @transform_2, window_bounds = array<i64: 2, 8, 32>}, {transform_indices = @transform_3, window_bounds = array<i64: 2, 8, 32>}]} {
    %c0 = arith.constant 0 : index
    %c0_0 = arith.constant 0 : index
    %c0_1 = arith.constant 0 : index
    %0 = vector.load %arg2[%c0, %c0_0, %c0_1] : memref<2x8x32xf32, #tpu.memory_space<vmem>>, vector<2x8x32xf32>
    %c0_2 = arith.constant 0 : index
    %c0_3 = arith.constant 0 : index
    %c0_4 = arith.constant 0 : index
    %1 = vector.load %arg3[%c0_2, %c0_3, %c0_4] : memref<2x8x32xf32, #tpu.memory_space<vmem>>, vector<2x8x32xf32>
    %c0_5 = arith.constant 0 : index
    %c0_6 = arith.constant 0 : index
    %c0_7 = arith.constant 0 : index
    %2 = vector.load %arg4[%c0_5, %c0_6, %c0_7] : memref<2x8x32xf32, #tpu.memory_space<vmem>>, vector<2x8x32xf32>
    %cst = arith.constant 0.176776692 : f32
    %3 = vector.broadcast %cst : f32 to vector<2x8x32xf32>
    %4 = arith.mulf %0, %3 : vector<2x8x32xf32>
    %cst_8 = arith.constant dense<0.000000e+00> : vector<2x8x8xf32>
    %5 = tpu.matmul %4, %1, %cst_8 {dimension_numbers = #tpu.dot_dimension_numbers<[2], [2], [1], [1], [0, 0, 0, 1, 1, 1], [0], [0]>} : vector<2x8x32xf32>, vector<2x8x32xf32>, vector<2x8x8xf32> -> vector<2x8x8xf32>
    %cst_9 = arith.constant dense<0xFF800000> : vector<2x8xf32>
    %6 = vector.multi_reduction <maximumf>, %5, %cst_9 [2] : vector<2x8x8xf32> to vector<2x8xf32>
    %7 = vector.shape_cast %6 : vector<2x8xf32> to vector<2x8x1xf32>
    %8 = vector.broadcast %7 : vector<2x8x1xf32> to vector<2x8x8xf32>
    %9 = arith.subf %5, %8 : vector<2x8x8xf32>
    %10 = math.exp %9 : vector<2x8x8xf32>
    %cst_10 = arith.constant dense<0.000000e+00> : vector<2x8xf32>
    %11 = vector.multi_reduction <add>, %10, %cst_10 [2] : vector<2x8x8xf32> to vector<2x8xf32>
    %12 = vector.shape_cast %11 : vector<2x8xf32> to vector<2x8x1xf32>
    %cst_11 = arith.constant 1.17549435E-38 : f32
    %13 = vector.broadcast %cst_11 : f32 to vector<2x8x1xf32>
    %14 = arith.maximumf %12, %13 : vector<2x8x1xf32>
    %15 = tpu.reciprocal %14 {approx = true} : vector<2x8x1xf32> -> vector<2x8x1xf32>
    %16 = vector.broadcast %15 : vector<2x8x1xf32> to vector<2x8x8xf32>
    %17 = arith.mulf %10, %16 : vector<2x8x8xf32>
    %cst_12 = arith.constant dense<0.000000e+00> : vector<2x8x32xf32>
    %18 = tpu.matmul %17, %2, %cst_12 {dimension_numbers = #tpu.dot_dimension_numbers<[2], [1], [1], [2], [0, 0, 0, 1, 1, 2], [0], [0]>} : vector<2x8x8xf32>, vector<2x8x32xf32>, vector<2x8x32xf32> -> vector<2x8x32xf32>
    %c0_13 = arith.constant 0 : index
    %c0_14 = arith.constant 0 : index
    %c0_15 = arith.constant 0 : index
    %19 = vector.load %arg5[%c0_13, %c0_14, %c0_15] : memref<2x8x32xf32, #tpu.memory_space<vmem>>, vector<2x8x32xf32>
    tpu.vector_store %arg5[%c0_13, %c0_14, %c0_15], %18 {strides = array<i32>} : memref<2x8x32xf32, #tpu.memory_space<vmem>>, vector<2x8x32xf32>,
    return
  }
  func.func @transform_0(%arg0: i32, %arg1: i32) -> (i32, i32, i32) {
    %c0_i32 = arith.constant 0 : i32
    %c0_i32_0 = arith.constant 0 : i32
    return %arg0, %arg1, %c0_i32 : i32, i32, i32
  }
  func.func @transform_1(%arg0: i32, %arg1: i32) -> (i32, i32, i32) {
    %c0_i32 = arith.constant 0 : i32
    %c0_i32_0 = arith.constant 0 : i32
    %c0_i32_1 = arith.constant 0 : i32
    return %arg0, %c0_i32, %c0_i32_0 : i32, i32, i32
  }
  func.func @transform_2(%arg0: i32, %arg1: i32) -> (i32, i32, i32) {
    %c0_i32 = arith.constant 0 : i32
    %c0_i32_0 = arith.constant 0 : i32
    %c0_i32_1 = arith.constant 0 : i32
    return %arg0, %c0_i32, %c0_i32_0 : i32, i32, i32
  }
  func.func @transform_3(%arg0: i32, %arg1: i32) -> (i32, i32, i32) {
    %c0_i32 = arith.constant 0 : i32
    %c0_i32_0 = arith.constant 0 : i32
    return %arg0, %arg1, %c0_i32 : i32, i32, i32
  }
}

</mosaic_0001>

<llo_original>
// kernel: tpu_custom_call.1
$region0: #{tpu_custom_call.1}
  #allocation0 [shape = 'u32[]', space=smem, size = 0x4, offset = 0x4, fixed_abs, tag = 'smem constant byte address 0x4 - core index']
  #allocation1 [shape = 'u32[144,128]{1,0:T(1,128)}', space=vmem, size = 0x12000, scoped, tag = 'internal scratch']
  %s0 = inlined_call_operand.hbm [shape: f32[2,8,32], index: 0, kind: input, shape index: {}]
  %s1 = inlined_call_operand.hbm [shape: f32[2,8,32], index: 1, kind: input, shape index: {}]
  %s2 = inlined_call_operand.hbm [shape: f32[2,8,32], index: 2, kind: input, shape index: {}]
  %s3 = inlined_call_operand.hbm [shape: f32[2,8,32], index: 3, kind: output, shape index: {}]
  %s4 = sld [smem:[#allocation0]]
  $region34: #{tpu_custom_call.1} parent=0
    _
  %s6 = ssub.s32 1, %s4
  %s7 = scalar_select 0, %s6, %s4
  $region1: #{tpu_custom_call.1} parent=0
    #allocation2 [shape = 'u8[8192]{0}', space=vmem, size = 0x2000, scoped, tag = 'input window, operand 0, single buffered']
    #allocation3 [shape = 's32[1]{0}', space=sflag, size = 0x4, scoped, tag = 'scoped memory for tpu_custom_call.1']
    #allocation4 [shape = 's32[1]{0}', space=sflag, size = 0x4, scoped, tag = 'scoped memory for tpu_custom_call.1']
    #allocation5 [shape = 'u8[8192]{0}', space=vmem, size = 0x2000, scoped, tag = 'input window, operand 1, single buffered']
    #allocation6 [shape = 's32[1]{0}', space=sflag, size = 0x4, scoped, tag = 'scoped memory for tpu_custom_call.1']
    #allocation7 [shape = 'u8[8192]{0}', space=vmem, size = 0x2000, scoped, tag = 'input window, operand 2, single buffered']
    #allocation8 [shape = 'u8[8192]{0}', space=vmem, size = 0x2000, scoped, tag = 'output window, operand 0, single buffered']
    %8 = vsyncpa [#allocation3], 0
    %9 = vsyncpa [#allocation6], 0
    %10 = vsyncpa [#allocation4], 0
    // Predicated region
    $region2: #{tpu_custom_call.1} parent=1 // pred_check
      _
    $region3: #{tpu_custom_call.1} parent=1 // pred_check_branch
      %12 = sbr.rel (0) target = $region5
    $region4: #{tpu_custom_call.1} parent=1 // pred_region
      %s14 = ssub.s32 256, 256
      %15 = vsyncadd [#allocation3], %s14
      %s16 = sshll.u32 [#allocation2], 4
      %s17 = int_to_ptr.vmem [resolvable:$true] %s16
      %22 = dma.hbm_to_vmem [thread:$0]  %s0, 256, %s17, [#allocation3], 128, 128, 8
    $region5: #{tpu_custom_call.1} parent=1 // pred_fallthru
      _
    // Predicated region
    $region6: #{tpu_custom_call.1} parent=1 // pred_check
      _
    $region7: #{tpu_custom_call.1} parent=1 // pred_check_branch
      %24 = sbr.rel (0) target = $region9
    $region8: #{tpu_custom_call.1} parent=1 // pred_region
      %s26 = ssub.s32 256, 256
      %27 = vsyncadd [#allocation6], %s26
      %s28 = sshll.u32 [#allocation5], 4
      %s29 = int_to_ptr.vmem [resolvable:$true] %s28
      %34 = dma.hbm_to_vmem [thread:$0]  %s1, 256, %s29, [#allocation6], 128, 128, 8
    $region9: #{tpu_custom_call.1} parent=1 // pred_fallthru
      _
    // Predicated region
    $region10: #{tpu_custom_call.1} parent=1 // pred_check
      _
    $region11: #{tpu_custom_call.1} parent=1 // pred_check_branch
      %36 = sbr.rel (0) target = $region13
    $region12: #{tpu_custom_call.1} parent=1 // pred_region
      %s38 = ssub.s32 256, 256
      %39 = vsyncadd [#allocation6], %s38
      %s40 = sshll.u32 [#allocation7], 4
      %s41 = int_to_ptr.vmem [resolvable:$true] %s40
      %46 = dma.hbm_to_vmem [thread:$0]  %s2, 256, %s41, [#allocation6], 128, 128, 8
    $region13: #{tpu_custom_call.1} parent=1 // pred_fallthru
      _
    // Predicated region
    $region14: #{tpu_custom_call.1} parent=1 // pred_check
      _
    $region15: #{tpu_custom_call.1} parent=1 // pred_check_branch
      %48 = sbr.rel (0) target = $region17
    $region16: #{tpu_custom_call.1} parent=1 // pred_region
      %49 = dma.done [#allocation3], 256
    $region17: #{tpu_custom_call.1} parent=1 // pred_fallthru
      _
    // Predicated region
    $region18: #{tpu_custom_call.1} parent=1 // pred_check
      _
    $region19: #{tpu_custom_call.1} parent=1 // pred_check_branch
      %51 = sbr.rel (0) target = $region21
    $region20: #{tpu_custom_call.1} parent=1 // pred_region
      %52 = dma.done [#allocation6], 256
    $region21: #{tpu_custom_call.1} parent=1 // pred_fallthru
      _
    // Predicated region
    $region22: #{tpu_custom_call.1} parent=1 // pred_check
      _
    $region23: #{tpu_custom_call.1} parent=1 // pred_check_branch
      %54 = sbr.rel (0) target = $region25
    $region24: #{tpu_custom_call.1} parent=1 // pred_region
      %55 = dma.done [#allocation6], 256
    $region25: #{tpu_custom_call.1} parent=1 // pred_fallthru
      _
    %v56 = vld [vmem:[#allocation2] sm:$0xff]
    %v57 = vld [vmem:[#allocation2 + $0x8] sm:$0xff]
    %v58 = vld [vmem:[#allocation5] sm:$0xff]
    %v59 = vld [vmem:[#allocation5 + $0x8] sm:$0xff]
    %v60 = vld [vmem:[#allocation7] sm:$0xff]
    %v61 = vld [vmem:[#allocation7 + $0x8] sm:$0xff]
    %v62 = vmul.f32 %v56, 0.17677669
    %v63 = vmul.f32 %v57, 0.17677669
    %vm64 = vcmask 261120
    %v66 = vsel %vm64, %v62, 0
    %v69 = vsel %vm64, %v58, 0
    %71 = vmatprep.subr.mxu0 0.0
    %72 = vmatpush1.xpose.msra.mxu0 %v69
    %73 = vmatprep.subr.mxu0 0.0
    %74 = vmatpush1.xpose.msra.mxu0 0.0
    %75 = vmatprep.subr.mxu0 0.0
    %76 = vmatpush1.xpose.msra.mxu0 0.0
    %77 = vmatprep.subr.mxu0 0.0
    %78 = vmatpush1.xpose.msra.mxu0 0.0
    %79 = vmatprep.subr.mxu0 0.0
    %80 = vmatpush1.xpose.msra.mxu0 0.0
    %81 = vmatprep.subr.mxu0 0.0
    %82 = vmatpush1.xpose.msra.mxu0 0.0
    %83 = vmatprep.subr.mxu0 0.0
    %84 = vmatpush1.xpose.msra.mxu0 0.0
    %85 = vmatprep.subr.mxu0 0.0
    %86 = vmatpush1.xpose.msra.mxu0 0.0
    %87 = vmatprep.subr.mxu0 0.0
    %88 = vmatpush1.xpose.msra.mxu0 0.0
    %89 = vmatprep.subr.mxu0 0.0
    %90 = vmatpush1.xpose.msra.mxu0 0.0
    %91 = vmatprep.subr.mxu0 0.0
    %92 = vmatpush1.xpose.msra.mxu0 0.0
    %93 = vmatprep.subr.mxu0 0.0
    %94 = vmatpush1.xpose.msra.mxu0 0.0
    %95 = vmatprep.subr.mxu0 0.0
    %96 = vmatpush1.xpose.msra.mxu0 0.0
    %97 = vmatprep.subr.mxu0 0.0
    %98 = vmatpush1.xpose.msra.mxu0 0.0
    %99 = vmatprep.subr.mxu0 0.0
    %100 = vmatpush1.xpose.msra.mxu0 0.0
    %101 = vmatprep.subr.mxu0 0.0
    %102 = vmatpush1.xpose.msra.mxu0 0.0
    %103 = vmatprep.subr.mxu0 0.0
    %104 = vmatpush1.xpose.msra.mxu0 0.0
    %105 = vmatprep.subr.mxu0 0.0
    %106 = vmatpush1.xpose.msra.mxu0 0.0
    %107 = vmatprep.subr.mxu0 0.0
    %108 = vmatpush1.xpose.msra.mxu0 0.0
    %109 = vmatprep.subr.mxu0 0.0
    %110 = vmatpush1.xpose.msra.mxu0 0.0
    %111 = vmatprep.subr.mxu0 0.0
    %112 = vmatpush1.xpose.msra.mxu0 0.0
    %113 = vmatprep.subr.mxu0 0.0
    %114 = vmatpush1.xpose.msra.mxu0 0.0
    %115 = vmatprep.subr.mxu0 0.0
    %116 = vmatpush1.xpose.msra.mxu0 0.0
    %117 = vmatprep.subr.mxu0 0.0
    %118 = vmatpush1.xpose.msra.mxu0 0.0
    %119 = vmatprep.subr.mxu0 0.0
    %120 = vmatpush1.xpose.msra.mxu0 0.0
    %121 = vmatprep.subr.mxu0 0.0
    %122 = vmatpush1.xpose.msra.mxu0 0.0
    %123 = vmatprep.subr.mxu0 0.0
    %124 = vmatpush1.xpose.msra.mxu0 0.0
    %125 = vmatprep.subr.mxu0 0.0
    %126 = vmatpush1.xpose.msra.mxu0 0.0
    %127 = vmatprep.subr.mxu0 0.0
    %128 = vmatpush1.xpose.msra.mxu0 0.0
    %129 = vmatprep.subr.mxu0 0.0
    %130 = vmatpush1.xpose.msra.mxu0 0.0
    %131 = vmatprep.subr.mxu0 0.0
    %132 = vmatpush1.xpose.msra.mxu0 0.0
    %133 = vmatprep.subr.mxu0 0.0
    %134 = vmatpush1.xpose.msra.mxu0 0.0
    %135 = vmatprep.mubr.f32.mxu0 0.0
    %136 = vmatmul.mubr.f32.gmra.mrb[0].mxu0 %v66
    %v137 = vpop.f32.mrb[0].mxu0
    %v138 = vadd.f32 0.0, %v137
    %v139 = vpop.f32.mrb[0].mxu0
    %140 = vdwg.mxu0
    %v142 = vsel %vm64, %v63, 0
    %v145 = vsel %vm64, %v59, 0
    %147 = vmatprep.subr.mxu0 0.0
    %148 = vmatpush1.xpose.msra.mxu0 %v145
    %149 = vmatprep.subr.mxu0 0.0
    %150 = vmatpush1.xpose.msra.mxu0 0.0
    %151 = vmatprep.subr.mxu0 0.0
    %152 = vmatpush1.xpose.msra.mxu0 0.0
    %153 = vmatprep.subr.mxu0 0.0
    %154 = vmatpush1.xpose.msra.mxu0 0.0
    %155 = vmatprep.subr.mxu0 0.0
    %156 = vmatpush1.xpose.msra.mxu0 0.0
    %157 = vmatprep.subr.mxu0 0.0
    %158 = vmatpush1.xpose.msra.mxu0 0.0
    %159 = vmatprep.subr.mxu0 0.0
    %160 = vmatpush1.xpose.msra.mxu0 0.0
    %161 = vmatprep.subr.mxu0 0.0
    %162 = vmatpush1.xpose.msra.mxu0 0.0
    %163 = vmatprep.subr.mxu0 0.0
    %164 = vmatpush1.xpose.msra.mxu0 0.0
    %165 = vmatprep.subr.mxu0 0.0
    %166 = vmatpush1.xpose.msra.mxu0 0.0
    %167 = vmatprep.subr.mxu0 0.0
    %168 = vmatpush1.xpose.msra.mxu0 0.0
    %169 = vmatprep.subr.mxu0 0.0
    %170 = vmatpush1.xpose.msra.mxu0 0.0
    %171 = vmatprep.subr.mxu0 0.0
    %172 = vmatpush1.xpose.msra.mxu0 0.0
    %173 = vmatprep.subr.mxu0 0.0
    %174 = vmatpush1.xpose.msra.mxu0 0.0
    %175 = vmatprep.subr.mxu0 0.0
    %176 = vmatpush1.xpose.msra.mxu0 0.0
    %177 = vmatprep.subr.mxu0 0.0
    %178 = vmatpush1.xpose.msra.mxu0 0.0
    %179 = vmatprep.subr.mxu0 0.0
    %180 = vmatpush1.xpose.msra.mxu0 0.0
    %181 = vmatprep.subr.mxu0 0.0
    %182 = vmatpush1.xpose.msra.mxu0 0.0
    %183 = vmatprep.subr.mxu0 0.0
    %184 = vmatpush1.xpose.msra.mxu0 0.0
    %185 = vmatprep.subr.mxu0 0.0
    %186 = vmatpush1.xpose.msra.mxu0 0.0
    %187 = vmatprep.subr.mxu0 0.0
    %188 = vmatpush1.xpose.msra.mxu0 0.0
    %189 = vmatprep.subr.mxu0 0.0
    %190 = vmatpush1.xpose.msra.mxu0 0.0
    %191 = vmatprep.subr.mxu0 0.0
    %192 = vmatpush1.xpose.msra.mxu0 0.0
    %193 = vmatprep.subr.mxu0 0.0
    %194 = vmatpush1.xpose.msra.mxu0 0.0
    %195 = vmatprep.subr.mxu0 0.0
    %196 = vmatpush1.xpose.msra.mxu0 0.0
    %197 = vmatprep.subr.mxu0 0.0
    %198 = vmatpush1.xpose.msra.mxu0 0.0
    %199 = vmatprep.subr.mxu0 0.0
    %200 = vmatpush1.xpose.msra.mxu0 0.0
    %201 = vmatprep.subr.mxu0 0.0
    %202 = vmatpush1.xpose.msra.mxu0 0.0
    %203 = vmatprep.subr.mxu0 0.0
    %204 = vmatpush1.xpose.msra.mxu0 0.0
    %205 = vmatprep.subr.mxu0 0.0
    %206 = vmatpush1.xpose.msra.mxu0 0.0
    %207 = vmatprep.subr.mxu0 0.0
    %208 = vmatpush1.xpose.msra.mxu0 0.0
    %209 = vmatprep.subr.mxu0 0.0
    %210 = vmatpush1.xpose.msra.mxu0 0.0
    %211 = vmatprep.mubr.f32.mxu0 0.0
    %212 = vmatmul.mubr.f32.gmra.mrb[0].mxu0 %v142
    %v213 = vpop.f32.mrb[0].mxu0
    %v214 = vadd.f32 0.0, %v213
    %v215 = vpop.f32.mrb[0].mxu0
    %216 = vdwg.mxu0
    %vm217 = vcmask 64512
    %v218 = vsel %vm217, %v138, -inf
    %219 = vmax.xlane.f32.xlu0 %v218
    %v220 = vpop.xlane.xlu0 %219
    %v221 = vsel %vm217, %v214, -inf
    %222 = vmax.xlane.f32.xlu0 %v221
    %v223 = vpop.xlane.xlu0 %222
    %v224 = vsub.f32 %v138, %v220
    %v225 = vsub.f32 %v214, %v223
    %v226 = vmul.f32 %v224, 1.442695
    %v227 = vpow.pop %v226
    %v228 = vmul.f32 %v225, 1.442695
    %v229 = vpow.pop %v228
    %v230 = vsel %vm217, %v227, 0.0
    %231 = vadd.xlane.f32.xlu0 %v230
    %v232 = vpop.xlane.xlu0 %231
    %v233 = vsel %vm217, %v229, 0.0
    %234 = vadd.xlane.f32.xlu0 %v233
    %v235 = vpop.xlane.xlu0 %234
    %v236 = vmax.f32 %v232, 1.1754944e-38
    %v237 = vmax.f32 %v235, 1.1754944e-38
    %v238 = vrcp.pop %v236
    %v239 = vrcp.pop %v237
    %v240 = vmul.f32 %v227, %v238
    %v241 = vmul.f32 %v229, %v239
    %v243 = vsel %vm217, %v240, 0
    %245 = vmatprep.subr.mxu0 0.0
    %246 = vmatpush1.msra.mxu0 %v60
    %247 = vmatprep.subr.mxu0 0.0
    %248 = vmatpush1.msra.mxu0 0.0
    %249 = vmatprep.subr.mxu0 0.0
    %250 = vmatpush1.msra.mxu0 0.0
    %251 = vmatprep.subr.mxu0 0.0
    %252 = vmatpush1.msra.mxu0 0.0
    %253 = vmatprep.subr.mxu0 0.0
    %254 = vmatpush1.msra.mxu0 0.0
    %255 = vmatprep.subr.mxu0 0.0
    %256 = vmatpush1.msra.mxu0 0.0
    %257 = vmatprep.subr.mxu0 0.0
    %258 = vmatpush1.msra.mxu0 0.0
    %259 = vmatprep.subr.mxu0 0.0
    %260 = vmatpush1.msra.mxu0 0.0
    %261 = vmatprep.subr.mxu0 0.0
    %262 = vmatpush1.msra.mxu0 0.0
    %263 = vmatprep.subr.mxu0 0.0
    %264 = vmatpush1.msra.mxu0 0.0
    %265 = vmatprep.subr.mxu0 0.0
    %266 = vmatpush1.msra.mxu0 0.0
    %267 = vmatprep.subr.mxu0 0.0
    %268 = vmatpush1.msra.mxu0 0.0
    %269 = vmatprep.subr.mxu0 0.0
    %270 = vmatpush1.msra.mxu0 0.0
    %271 = vmatprep.subr.mxu0 0.0
    %272 = vmatpush1.msra.mxu0 0.0
    %273 = vmatprep.subr.mxu0 0.0
    %274 = vmatpush1.msra.mxu0 0.0
    %275 = vmatprep.subr.mxu0 0.0
    %276 = vmatpush1.msra.mxu0 0.0
    %277 = vmatprep.subr.mxu0 0.0
    %278 = vmatpush1.msra.mxu0 0.0
    %279 = vmatprep.subr.mxu0 0.0
    %280 = vmatpush1.msra.mxu0 0.0
    %281 = vmatprep.subr.mxu0 0.0
    %282 = vmatpush1.msra.mxu0 0.0
    %283 = vmatprep.subr.mxu0 0.0
    %284 = vmatpush1.msra.mxu0 0.0
    %285 = vmatprep.subr.mxu0 0.0
    %286 = vmatpush1.msra.mxu0 0.0
    %287 = vmatprep.subr.mxu0 0.0
    %288 = vmatpush1.msra.mxu0 0.0
    %289 = vmatprep.subr.mxu0 0.0
    %290 = vmatpush1.msra.mxu0 0.0
    %291 = vmatprep.subr.mxu0 0.0
    %292 = vmatpush1.msra.mxu0 0.0
    %293 = vmatprep.subr.mxu0 0.0
    %294 = vmatpush1.msra.mxu0 0.0
    %295 = vmatprep.subr.mxu0 0.0
    %296 = vmatpush1.msra.mxu0 0.0
    %297 = vmatprep.subr.mxu0 0.0
    %298 = vmatpush1.msra.mxu0 0.0
    %299 = vmatprep.subr.mxu0 0.0
    %300 = vmatpush1.msra.mxu0 0.0
    %301 = vmatprep.subr.mxu0 0.0
    %302 = vmatpush1.msra.mxu0 0.0
    %303 = vmatprep.subr.mxu0 0.0
    %304 = vmatpush1.msra.mxu0 0.0
    %305 = vmatprep.subr.mxu0 0.0
    %306 = vmatpush1.msra.mxu0 0.0
    %307 = vmatprep.subr.mxu0 0.0
    %308 = vmatpush1.msra.mxu0 0.0
    %309 = vmatprep.mubr.f32.mxu0 0.0
    %310 = vmatmul.mubr.f32.gmra.mrb[0].mxu0 %v243
    %v311 = vpop.f32.mrb[0].mxu0
    %v312 = vadd.f32 0.0, %v311
    %v313 = vpop.f32.mrb[0].mxu0
    %314 = vdwg.mxu0
    %v316 = vsel %vm217, %v241, 0
    %318 = vmatprep.subr.mxu0 0.0
    %319 = vmatpush1.msra.mxu0 %v61
    %320 = vmatprep.subr.mxu0 0.0
    %321 = vmatpush1.msra.mxu0 0.0
    %322 = vmatprep.subr.mxu0 0.0
    %323 = vmatpush1.msra.mxu0 0.0
    %324 = vmatprep.subr.mxu0 0.0
    %325 = vmatpush1.msra.mxu0 0.0
    %326 = vmatprep.subr.mxu0 0.0
    %327 = vmatpush1.msra.mxu0 0.0
    %328 = vmatprep.subr.mxu0 0.0
    %329 = vmatpush1.msra.mxu0 0.0
    %330 = vmatprep.subr.mxu0 0.0
    %331 = vmatpush1.msra.mxu0 0.0
    %332 = vmatprep.subr.mxu0 0.0
    %333 = vmatpush1.msra.mxu0 0.0
    %334 = vmatprep.subr.mxu0 0.0
    %335 = vmatpush1.msra.mxu0 0.0
    %336 = vmatprep.subr.mxu0 0.0
    %337 = vmatpush1.msra.mxu0 0.0
    %338 = vmatprep.subr.mxu0 0.0
    %339 = vmatpush1.msra.mxu0 0.0
    %340 = vmatprep.subr.mxu0 0.0
    %341 = vmatpush1.msra.mxu0 0.0
    %342 = vmatprep.subr.mxu0 0.0
    %343 = vmatpush1.msra.mxu0 0.0
    %344 = vmatprep.subr.mxu0 0.0
    %345 = vmatpush1.msra.mxu0 0.0
    %346 = vmatprep.subr.mxu0 0.0
    %347 = vmatpush1.msra.mxu0 0.0
    %348 = vmatprep.subr.mxu0 0.0
    %349 = vmatpush1.msra.mxu0 0.0
    %350 = vmatprep.subr.mxu0 0.0
    %351 = vmatpush1.msra.mxu0 0.0
    %352 = vmatprep.subr.mxu0 0.0
    %353 = vmatpush1.msra.mxu0 0.0
    %354 = vmatprep.subr.mxu0 0.0
    %355 = vmatpush1.msra.mxu0 0.0
    %356 = vmatprep.subr.mxu0 0.0
    %357 = vmatpush1.msra.mxu0 0.0
    %358 = vmatprep.subr.mxu0 0.0
    %359 = vmatpush1.msra.mxu0 0.0
    %360 = vmatprep.subr.mxu0 0.0
    %361 = vmatpush1.msra.mxu0 0.0
    %362 = vmatprep.subr.mxu0 0.0
    %363 = vmatpush1.msra.mxu0 0.0
    %364 = vmatprep.subr.mxu0 0.0
    %365 = vmatpush1.msra.mxu0 0.0
    %366 = vmatprep.subr.mxu0 0.0
    %367 = vmatpush1.msra.mxu0 0.0
    %368 = vmatprep.subr.mxu0 0.0
    %369 = vmatpush1.msra.mxu0 0.0
    %370 = vmatprep.subr.mxu0 0.0
    %371 = vmatpush1.msra.mxu0 0.0
    %372 = vmatprep.subr.mxu0 0.0
    %373 = vmatpush1.msra.mxu0 0.0
    %374 = vmatprep.subr.mxu0 0.0
    %375 = vmatpush1.msra.mxu0 0.0
    %376 = vmatprep.subr.mxu0 0.0
    %377 = vmatpush1.msra.mxu0 0.0
    %378 = vmatprep.subr.mxu0 0.0
    %379 = vmatpush1.msra.mxu0 0.0
    %380 = vmatprep.subr.mxu0 0.0
    %381 = vmatpush1.msra.mxu0 0.0
    %382 = vmatprep.mubr.f32.mxu0 0.0
    %383 = vmatmul.mubr.f32.gmra.mrb[0].mxu0 %v316
    %v384 = vpop.f32.mrb[0].mxu0
    %v385 = vadd.f32 0.0, %v384
    %v386 = vpop.f32.mrb[0].mxu0
    %387 = vdwg.mxu0
    %388 = vst.msk [vmem:[#allocation8] sm:$0xff] %vm64, %v312
    %389 = vst.msk [vmem:[#allocation8 + $0x8] sm:$0xff] %vm64, %v385
    // Predicated region
    $region26: #{tpu_custom_call.1} parent=1 // pred_check
      _
    $region27: #{tpu_custom_call.1} parent=1 // pred_check_branch
      %391 = sbr.rel (0) target = $region29
    $region28: #{tpu_custom_call.1} parent=1 // pred_region
      %s393 = ssub.s32 256, 256
      %394 = vsyncadd [#allocation4], %s393
      %s395 = sshll.u32 [#allocation8], 4
      %s396 = int_to_ptr.vmem [resolvable:$true] %s395
      %401 = dma.vmem_to_hbm [thread:$0]  %s396, 256, %s3, [#allocation4], 128, 128, 8
    $region29: #{tpu_custom_call.1} parent=1 // pred_fallthru
      _
    // Predicated region
    $region30: #{tpu_custom_call.1} parent=1 // pred_check
      _
    $region31: #{tpu_custom_call.1} parent=1 // pred_check_branch
      %403 = sbr.rel (0) target = $region33
    $region32: #{tpu_custom_call.1} parent=1 // pred_region
      %404 = dma.done [#allocation4], 256
    $region33: #{tpu_custom_call.1} parent=1 // pred_fallthru
      _
    %405 = vsyncpa [#allocation3], 1
    %406 = vsyncpa [#allocation6], 1
    %407 = vsyncpa [#allocation4], 1

</llo_original>
